<compile_context>
chip_gen: v6e
topology: v6e:2x2x1
jax: 0.10.0
libtpu: 0.0.40
codegen_flags: <defaults>
</compile_context>

<pallas_src>
import functools

import jax
import jax.numpy as jnp
from jax.experimental import pallas as pl
from jax.experimental.pallas import tpu as pltpu


# ----------------------------------------------------------------------------- kernels
def _upsample_nearest_mxu_kernel(r_ref, x_ref, o_ref):
    """x_ref: (Cb, Th, W), r_ref: (W, s*W*s) 0/1 matrix, o_ref: (Cb, Th, s*W*s).

    One MXU matmul performs both the W-replication and the H-replication
    (the s identical output rows are the s identical W*s-wide groups of the
    wide output row)."""
    cb, th, w = x_ref.shape
    wide = o_ref.shape[-1]
    x2 = x_ref[...].reshape(cb * th, w)                       # leading-dim merge only
    y = jnp.dot(x2, r_ref[...], preferred_element_type=jnp.float32)
    o_ref[...] = y.astype(o_ref.dtype).reshape(cb, th, wide)  # minor dim unchanged


def _upsample_nearest_xlu_kernel(x_ref, o_ref, *, scale):
    """Fallback (integer dtypes / very large W): transpose + broadcast replication.
    x_ref: (Cb, Th, W) -> o_ref: (Cb, Th*s, W*s)."""
    s = scale
    cb, th, w = x_ref.shape
    x = x_ref[...]

    # lane (W) replication in transposed space
    x2 = x.reshape(cb * th, w)
    xt = x2.T                                                  # (W, R)
    xt = jnp.broadcast_to(xt[:, None, :], (w, s, cb * th))     # sublane broadcast
    xt = xt.reshape(w * s, cb * th)
    y = xt.T                                                   # (R, W*s)

    # sublane (H) replication
    y = y.reshape(cb, th, w * s)
    y = jnp.broadcast_to(y[:, :, None, :], (cb, th, s, w * s))
    o_ref[...] = y.reshape(cb, th * s, w * s)


# ----------------------------------------------------------------------------- tiling
def _divisors_desc(n):
    return [d for d in range(n, 0, -1) if n % d == 0]


def _choose_tiles(NC, H, W, s, itemsize, target_bytes=8 << 20):
    """Pick (Cb, Th) so each grid step moves ~target_bytes of HBM traffic while
    keeping blocks layout-friendly:
      * Th == H or Th % pack == 0, where pack is the dtype's native sublane
        packing multiple (8 for 32-bit, 16 for 16-bit, 32 for 8-bit types).
      * If Th is ragged (== H but not a multiple of pack), force Cb = 1 so all
        in-kernel reshapes stay layout-trivial leading-dim merges/splits."""
    pack = {4: 8, 2: 16, 1: 32}.get(itemsize, 8)

    def step_bytes(cb, th):
        return (1 + s * s) * cb * th * W * itemsize            # read + s^2 write

    th_opts = [d for d in _divisors_desc(H) if d == H or d % pack == 0]
    th = next((t for t in th_opts if step_bytes(1, t) <= target_bytes), th_opts[-1])
    if th % pack != 0:
        cb = 1
    else:
        cb = next((c for c in _divisors_desc(NC) if step_bytes(c, th) <= target_bytes), 1)
    return cb, th


# ----------------------------------------------------------------------------- wrapper
def upsample_nearest(x, scale):
    """Nearest-neighbour upsampling by an integer scale factor, NCHW layout."""
    s = int(scale)
    if s != scale or s < 1:
        # TODO(synk): F.interpolate('nearest') with fractional scale uses
        # floor(h_out * H_in / H_out) indexing; only integer scales (pure pixel
        # replication) are implemented here.
        raise NotImplementedError("only positive integer scale factors are supported")
    if s == 1:
        return x

    N, C, H, W = x.shape
    NC = N * C
    itemsize = jnp.dtype(x.dtype).itemsize
    Cb, Th = _choose_tiles(NC, H, W, s, itemsize)
    x3 = x.reshape(NC, H, W)

    total_bytes = x.size * itemsize * (1 + s * s)              # pure bandwidth op
    compiler_params = pltpu.CompilerParams(
        dimension_semantics=("parallel", "parallel"),
        vmem_limit_bytes=48 * 1024 * 1024,
    )

    wide = s * W * s
    use_mxu = (jnp.issubdtype(x.dtype, jnp.floating)
               and s * s * W * W * itemsize <= (8 << 20))      # R fits / stays mem-bound

    if use_mxu:
        # Constant replication matrix: R[w, m] = 1  iff  w == (m mod (W*s)) // s.
        m_idx = jax.lax.broadcasted_iota(jnp.int32, (W, wide), 1)
        w_idx = jax.lax.broadcasted_iota(jnp.int32, (W, wide), 0)
        rep = ((m_idx % (W * s)) // s == w_idx).astype(x.dtype)

        out3 = pl.pallas_call(
            _upsample_nearest_mxu_kernel,
            out_shape=jax.ShapeDtypeStruct((NC, H, wide), x.dtype),
            grid_spec=pltpu.PrefetchScalarGridSpec(
                num_scalar_prefetch=0,
                grid=(NC // Cb, H // Th),
                in_specs=[
                    pl.BlockSpec((W, wide), lambda i, h: (0, 0)),       # resident R
                    pl.BlockSpec((Cb, Th, W), lambda i, h: (i, h, 0)),
                ],
                out_specs=pl.BlockSpec((Cb, Th, wide), lambda i, h: (i, h, 0)),
            ),
            compiler_params=compiler_params,
            cost_estimate=pl.CostEstimate(
                flops=2 * W * NC * H * wide, transcendentals=0,
                bytes_accessed=total_bytes),
        )(rep, x3)
    else:
        # TODO(synk): integer dtypes / very large W use the XLU transpose path
        # (v7x MXU has no integer path); output layout is the plain (H*s, W*s) view.
        kernel = functools.partial(_upsample_nearest_xlu_kernel, scale=s)
        out3 = pl.pallas_call(
            kernel,
            out_shape=jax.ShapeDtypeStruct((NC, H * s, W * s), x.dtype),
            grid_spec=pltpu.PrefetchScalarGridSpec(
                num_scalar_prefetch=0,
                grid=(NC // Cb, H // Th),
                in_specs=[pl.BlockSpec((Cb, Th, W), lambda i, h: (i, h, 0))],
                out_specs=pl.BlockSpec((Cb, Th * s, W * s), lambda i, h: (i, h, 0)),
            ),
            compiler_params=compiler_params,
            cost_estimate=pl.CostEstimate(flops=0, transcendentals=0,
                                          bytes_accessed=total_bytes),
        )(x3)

    return out3.reshape(N, C, H * s, W * s)


class UpsampleNearest:
    """Mirrors the PyTorch _UpsampleNearest module interface."""

    def __init__(self, scale):
        self.scale = scale

    def __call__(self, x, scale=None):
        return upsample_nearest(x, scale or self.scale)


def _ref_upsample_nearest(x, s):
    # Pure-JAX reference for F.interpolate(x, scale_factor=s) with mode='nearest'.
    return jnp.repeat(jnp.repeat(x, s, axis=-2), s, axis=-1)


if __name__ == "__main__":
    key = jax.random.PRNGKey(0)
    k0, k1, k2 = jax.random.split(key, 3)

    # main demo: matches the module's typical use (NCHW feature map, scale=2)
    N, C, H, W = 2, 4, 16, 16
    up = UpsampleNearest(2)
    x = jax.random.normal(k0, (N, C, H, W), dtype=jnp.float32)
    out = jax.block_until_ready(up(x))
    exp = _ref_upsample_nearest(x, 2)
    assert out.shape == exp.shape and out.dtype == exp.dtype, (out.shape, out.dtype)
    assert bool(jnp.array_equal(out, exp)), "mismatch vs reference (f32, s=2)"

    # odd scale factor, different shape (still the MXU replication path)
    x3 = jax.random.normal(k1, (1, 3, 8, 16), dtype=jnp.float32)
    o3 = jax.block_until_ready(upsample_nearest(x3, 3))
    assert bool(jnp.array_equal(o3, _ref_upsample_nearest(x3, 3))), "mismatch (f32, s=3)"

    # bf16 activations (exactness preserved: 0/1 weights, f32 accumulation)
    xb = jax.random.normal(k2, (2, 2, 16, 16), dtype=jnp.float32).astype(jnp.bfloat16)
    ob = jax.block_until_ready(upsample_nearest(xb, 2))
    assert bool(jnp.array_equal(ob, _ref_upsample_nearest(xb, 2))), "mismatch (bf16, s=2)"

    print("KERNEL_OK")
</pallas_src>

<mosaic_0001>
module attributes {stable_mosaic.version = 11 : i64} {
  func.func @_upsample_nearest_mxu_kernel(%arg0: i32, %arg1: i32, %arg2: memref<16x64xf32, #tpu.memory_space<vmem>>, %arg3: memref<8x16x16xf32, #tpu.memory_space<vmem>>, %arg4: memref<8x16x64xf32, #tpu.memory_space<vmem>>) attributes {dimension_semantics = [#tpu.dimension_semantics<parallel>, #tpu.dimension_semantics<parallel>], iteration_bounds = array<i64: 1, 1>, scalar_prefetch = 0 : i64, scratch_operands = 0 : i64, tpu.core_type = #tpu.core_type<tc>, window_params = [{pipeline_mode = #tpu.pipeline_mode<synchronous>, transform_indices = @transform_0, window_bounds = array<i64: 16, 64>}, {transform_indices = @transform_1, window_bounds = array<i64: 8, 16, 16>}, {transform_indices = @transform_2, window_bounds = array<i64: 8, 16, 64>}]} {
    %c0 = arith.constant 0 : index
    %c0_0 = arith.constant 0 : index
    %c0_1 = arith.constant 0 : index
    %0 = vector.load %arg3[%c0, %c0_0, %c0_1] : memref<8x16x16xf32, #tpu.memory_space<vmem>>, vector<8x16x16xf32>
    %1 = vector.shape_cast %0 : vector<8x16x16xf32> to vector<128x16xf32>
    %c0_2 = arith.constant 0 : index
    %c0_3 = arith.constant 0 : index
    %2 = vector.load %arg2[%c0_2, %c0_3] : memref<16x64xf32, #tpu.memory_space<vmem>>, vector<16x64xf32>
    %cst = arith.constant dense<0.000000e+00> : vector<128x64xf32>
    %3 = tpu.matmul %1, %2, %cst {dimension_numbers = #tpu.dot_dimension_numbers<[1], [0], [0], [1], [0, 0, 1, 1], [], []>} : vector<128x16xf32>, vector<16x64xf32>, vector<128x64xf32> -> vector<128x64xf32>
    %4 = vector.shape_cast %3 : vector<128x64xf32> to vector<8x16x64xf32>
    %c0_4 = arith.constant 0 : index
    %c0_5 = arith.constant 0 : index
    %c0_6 = arith.constant 0 : index
    %5 = vector.load %arg4[%c0_4, %c0_5, %c0_6] : memref<8x16x64xf32, #tpu.memory_space<vmem>>, vector<8x16x64xf32>
    tpu.vector_store %arg4[%c0_4, %c0_5, %c0_6], %4 {strides = array<i32>} : memref<8x16x64xf32, #tpu.memory_space<vmem>>, vector<8x16x64xf32>,
    return
  }
  func.func @transform_0(%arg0: i32, %arg1: i32) -> (i32, i32) {
    %c0_i32 = arith.constant 0 : i32
    %c0_i32_0 = arith.constant 0 : i32
    %c0_i32_1 = arith.constant 0 : i32
    return %c0_i32, %c0_i32_0 : i32, i32
  }
  func.func @transform_1(%arg0: i32, %arg1: i32) -> (i32, i32, i32) {
    %c0_i32 = arith.constant 0 : i32
    %c0_i32_0 = arith.constant 0 : i32
    return %arg0, %arg1, %c0_i32 : i32, i32, i32
  }
  func.func @transform_2(%arg0: i32, %arg1: i32) -> (i32, i32, i32) {
    %c0_i32 = arith.constant 0 : i32
    %c0_i32_0 = arith.constant 0 : i32
    return %arg0, %arg1, %c0_i32 : i32, i32, i32
  }
}

</mosaic_0001>

<llo_original>
// kernel: tpu_custom_call.1
$region0: #{tpu_custom_call.1}
  #allocation0 [shape = 'u32[]', space=smem, size = 0x4, offset = 0x4, fixed_abs, tag = 'smem constant byte address 0x4 - core index']
  #allocation1 [shape = 'u32[144,128]{1,0:T(1,128)}', space=vmem, size = 0x12000, scoped, tag = 'internal scratch']
  %s0 = inlined_call_operand.hbm [shape: f32[16,64], index: 0, kind: input, shape index: {}]
  %s1 = inlined_call_operand.hbm [shape: f32[8,16,16], index: 1, kind: input, shape index: {}]
  %s2 = inlined_call_operand.hbm [shape: f32[8,16,64], index: 2, kind: output, shape index: {}]
  %s3 = sld [smem:[#allocation0]]
  $region26: #{tpu_custom_call.1} parent=0
    _
  %s5 = ssub.s32 1, %s3
  %s6 = scalar_select 0, %s5, %s3
  $region1: #{tpu_custom_call.1} parent=0
    #allocation2 [shape = 'u8[8192]{0}', space=vmem, size = 0x2000, scoped, tag = 'input window, operand 0, single buffered']
    #allocation3 [shape = 's32[1]{0}', space=sflag, size = 0x4, scoped, tag = 'scoped memory for tpu_custom_call.1']
    #allocation4 [shape = 's32[1]{0}', space=sflag, size = 0x4, scoped, tag = 'scoped memory for tpu_custom_call.1']
    #allocation5 [shape = 'u8[65536]{0}', space=vmem, size = 0x10000, scoped, tag = 'input window, operand 1, single buffered']
    #allocation6 [shape = 's32[1]{0}', space=sflag, size = 0x4, scoped, tag = 'scoped memory for tpu_custom_call.1']
    #allocation7 [shape = 'u8[65536]{0}', space=vmem, size = 0x10000, scoped, tag = 'output window, operand 0, single buffered']
    %7 = vsyncpa [#allocation3], 0
    %8 = vsyncpa [#allocation6], 0
    %9 = vsyncpa [#allocation4], 0
    // Predicated region
    $region2: #{tpu_custom_call.1} parent=1 // pred_check
      _
    $region3: #{tpu_custom_call.1} parent=1 // pred_check_branch
      %11 = sbr.rel (0) target = $region5
    $region4: #{tpu_custom_call.1} parent=1 // pred_region
      %s13 = ssub.s32 256, 256
      %14 = vsyncadd [#allocation3], %s13
      %s15 = sshll.u32 [#allocation2], 4
      %s16 = int_to_ptr.vmem [resolvable:$true] %s15
      %21 = dma.hbm_to_vmem [thread:$0]  %s0, 256, %s16, [#allocation3], 128, 128, 8
    $region5: #{tpu_custom_call.1} parent=1 // pred_fallthru
      _
    // Predicated region
    $region6: #{tpu_custom_call.1} parent=1 // pred_check
      _
    $region7: #{tpu_custom_call.1} parent=1 // pred_check_branch
      %23 = sbr.rel (0) target = $region9
    $region8: #{tpu_custom_call.1} parent=1 // pred_region
      %s25 = ssub.s32 2048, 2048
      %26 = vsyncadd [#allocation6], %s25
      %s27 = sshll.u32 [#allocation5], 4
      %s28 = int_to_ptr.vmem [resolvable:$true] %s27
      %33 = dma.hbm_to_vmem [thread:$0]  %s1, 2048, %s28, [#allocation6], 128, 128, 8
    $region9: #{tpu_custom_call.1} parent=1 // pred_fallthru
      _
    // Predicated region
    $region10: #{tpu_custom_call.1} parent=1 // pred_check
      _
    $region11: #{tpu_custom_call.1} parent=1 // pred_check_branch
      %35 = sbr.rel (0) target = $region13
    $region12: #{tpu_custom_call.1} parent=1 // pred_region
      %36 = dma.done [#allocation3], 256
    $region13: #{tpu_custom_call.1} parent=1 // pred_fallthru
      _
    // Predicated region
    $region14: #{tpu_custom_call.1} parent=1 // pred_check
      _
    $region15: #{tpu_custom_call.1} parent=1 // pred_check_branch
      %38 = sbr.rel (0) target = $region17
    $region16: #{tpu_custom_call.1} parent=1 // pred_region
      %39 = dma.done [#allocation6], 2048
    $region17: #{tpu_custom_call.1} parent=1 // pred_fallthru
      _
    %v40 = vld [vmem:[#allocation5] sm:$0xff]
    %v41 = vld [vmem:[#allocation5 + $0x8] sm:$0xff]
    %v42 = vld [vmem:[#allocation5 + $0x10] sm:$0xff]
    %v43 = vld [vmem:[#allocation5 + $0x18] sm:$0xff]
    %v44 = vld [vmem:[#allocation5 + $0x20] sm:$0xff]
    %v45 = vld [vmem:[#allocation5 + $0x28] sm:$0xff]
    %v46 = vld [vmem:[#allocation5 + $0x30] sm:$0xff]
    %v47 = vld [vmem:[#allocation5 + $0x38] sm:$0xff]
    %v48 = vld [vmem:[#allocation5 + $0x40] sm:$0xff]
    %v49 = vld [vmem:[#allocation5 + $0x48] sm:$0xff]
    %v50 = vld [vmem:[#allocation5 + $0x50] sm:$0xff]
    %v51 = vld [vmem:[#allocation5 + $0x58] sm:$0xff]
    %v52 = vld [vmem:[#allocation5 + $0x60] sm:$0xff]
    %v53 = vld [vmem:[#allocation5 + $0x68] sm:$0xff]
    %v54 = vld [vmem:[#allocation5 + $0x70] sm:$0xff]
    %v55 = vld [vmem:[#allocation5 + $0x78] sm:$0xff]
    %v56 = vld [vmem:[#allocation2] sm:$0xff]
    %v57 = vld [vmem:[#allocation2 + $0x8] sm:$0xff]
    %vm58 = vcmask 130048
    %v60 = vsel %vm58, %v40, 0
    %v63 = vsel %vm58, %v41, 0
    %v66 = vsel %vm58, %v42, 0
    %v69 = vsel %vm58, %v43, 0
    %v72 = vsel %vm58, %v44, 0
    %v75 = vsel %vm58, %v45, 0
    %v78 = vsel %vm58, %v46, 0
    %v81 = vsel %vm58, %v47, 0
    %v84 = vsel %vm58, %v48, 0
    %v87 = vsel %vm58, %v49, 0
    %v90 = vsel %vm58, %v50, 0
    %v93 = vsel %vm58, %v51, 0
    %v96 = vsel %vm58, %v52, 0
    %v99 = vsel %vm58, %v53, 0
    %v102 = vsel %vm58, %v54, 0
    %v105 = vsel %vm58, %v55, 0
    %107 = vmatprep.subr.mxu0 0.0
    %108 = vmatpush1.msra.mxu0 0.0
    %109 = vmatprep.subr.mxu0 0.0
    %110 = vmatpush1.msra.mxu0 0.0
    %111 = vmatprep.subr.mxu0 0.0
    %112 = vmatpush1.msra.mxu0 0.0
    %113 = vmatprep.subr.mxu0 0.0
    %114 = vmatpush1.msra.mxu0 0.0
    %115 = vmatprep.subr.mxu0 0.0
    %116 = vmatpush1.msra.mxu0 0.0
    %117 = vmatprep.subr.mxu0 0.0
    %118 = vmatpush1.msra.mxu0 0.0
    %119 = vmatprep.subr.mxu0 0.0
    %120 = vmatpush1.msra.mxu0 0.0
    %121 = vmatprep.subr.mxu0 0.0
    %122 = vmatpush1.msra.mxu0 0.0
    %123 = vmatprep.subr.mxu0 0.0
    %124 = vmatpush1.msra.mxu0 0.0
    %125 = vmatprep.subr.mxu0 0.0
    %126 = vmatpush1.msra.mxu0 0.0
    %127 = vmatprep.subr.mxu0 0.0
    %128 = vmatpush1.msra.mxu0 0.0
    %129 = vmatprep.subr.mxu0 0.0
    %130 = vmatpush1.msra.mxu0 0.0
    %131 = vmatprep.subr.mxu0 0.0
    %132 = vmatpush1.msra.mxu0 0.0
    %133 = vmatprep.subr.mxu0 0.0
    %134 = vmatpush1.msra.mxu0 0.0
    %135 = vmatprep.subr.mxu0 0.0
    %136 = vmatpush1.msra.mxu0 %v57
    %137 = vmatprep.subr.mxu0 0.0
    %138 = vmatpush1.msra.mxu0 %v56
    %139 = vmatprep.subr.mxu0 0.0
    %140 = vmatpush2.msra.mxu0 0.0
    %141 = vmatprep.subr.mxu0 0.0
    %142 = vmatpush2.msra.mxu0 0.0
    %143 = vmatprep.subr.mxu0 0.0
    %144 = vmatpush2.msra.mxu0 0.0
    %145 = vmatprep.subr.mxu0 0.0
    %146 = vmatpush2.msra.mxu0 0.0
    %147 = vmatprep.subr.mxu0 0.0
    %148 = vmatpush2.msra.mxu0 0.0
    %149 = vmatprep.subr.mxu0 0.0
    %150 = vmatpush2.msra.mxu0 0.0
    %151 = vmatprep.subr.mxu0 0.0
    %152 = vmatpush2.msra.mxu0 0.0
    %153 = vmatprep.subr.mxu0 0.0
    %154 = vmatpush2.msra.mxu0 0.0
    %155 = vmatprep.subr.mxu0 0.0
    %156 = vmatpush2.msra.mxu0 0.0
    %157 = vmatprep.subr.mxu0 0.0
    %158 = vmatpush2.msra.mxu0 0.0
    %159 = vmatprep.subr.mxu0 0.0
    %160 = vmatpush2.msra.mxu0 0.0
    %161 = vmatprep.subr.mxu0 0.0
    %162 = vmatpush2.msra.mxu0 0.0
    %163 = vmatprep.subr.mxu0 0.0
    %164 = vmatpush2.msra.mxu0 0.0
    %165 = vmatprep.subr.mxu0 0.0
    %166 = vmatpush2.msra.mxu0 0.0
    %167 = vmatprep.subr.mxu0 0.0
    %168 = vmatpush2.msra.mxu0 0.0
    %169 = vmatprep.subr.mxu0 0.0
    %170 = vmatpush2.msra.mxu0 0.0
    %171 = vmatprep.mubr.f32.mxu0 0.0
    %172 = vmatmul.mubr.f32.gmra.mxu0 %v60
    %v173 = vpop.f32.mrf.mxu0
    %v174 = vadd.f32 0.0, %v173
    %v175 = vpop.f32.mrf.mxu0
    %176 = vmatprep.mubr.f32.mxu0 0.0
    %177 = vmatmul.mubr.f32.gmra.mxu0 %v63
    %v178 = vpop.f32.mrf.mxu0
    %v179 = vadd.f32 0.0, %v178
    %v180 = vpop.f32.mrf.mxu0
    %181 = vmatprep.mubr.f32.mxu0 0.0
    %182 = vmatmul.mubr.f32.gmra.mxu0 %v66
    %v183 = vpop.f32.mrf.mxu0
    %v184 = vadd.f32 0.0, %v183
    %v185 = vpop.f32.mrf.mxu0
    %186 = vmatprep.mubr.f32.mxu0 0.0
    %187 = vmatmul.mubr.f32.gmra.mxu0 %v69
    %v188 = vpop.f32.mrf.mxu0
    %v189 = vadd.f32 0.0, %v188
    %v190 = vpop.f32.mrf.mxu0
    %191 = vmatprep.mubr.f32.mxu0 0.0
    %192 = vmatmul.mubr.f32.gmra.mxu0 %v72
    %v193 = vpop.f32.mrf.mxu0
    %v194 = vadd.f32 0.0, %v193
    %v195 = vpop.f32.mrf.mxu0
    %196 = vmatprep.mubr.f32.mxu0 0.0
    %197 = vmatmul.mubr.f32.gmra.mxu0 %v75
    %v198 = vpop.f32.mrf.mxu0
    %v199 = vadd.f32 0.0, %v198
    %v200 = vpop.f32.mrf.mxu0
    %201 = vmatprep.mubr.f32.mxu0 0.0
    %202 = vmatmul.mubr.f32.gmra.mxu0 %v78
    %v203 = vpop.f32.mrf.mxu0
    %v204 = vadd.f32 0.0, %v203
    %v205 = vpop.f32.mrf.mxu0
    %206 = vmatprep.mubr.f32.mxu0 0.0
    %207 = vmatmul.mubr.f32.gmra.mxu0 %v81
    %v208 = vpop.f32.mrf.mxu0
    %v209 = vadd.f32 0.0, %v208
    %v210 = vpop.f32.mrf.mxu0
    %211 = vmatprep.mubr.f32.mxu0 0.0
    %212 = vmatmul.mubr.f32.gmra.mxu0 %v84
    %v213 = vpop.f32.mrf.mxu0
    %v214 = vadd.f32 0.0, %v213
    %v215 = vpop.f32.mrf.mxu0
    %216 = vmatprep.mubr.f32.mxu0 0.0
    %217 = vmatmul.mubr.f32.gmra.mxu0 %v87
    %v218 = vpop.f32.mrf.mxu0
    %v219 = vadd.f32 0.0, %v218
    %v220 = vpop.f32.mrf.mxu0
    %221 = vmatprep.mubr.f32.mxu0 0.0
    %222 = vmatmul.mubr.f32.gmra.mxu0 %v90
    %v223 = vpop.f32.mrf.mxu0
    %v224 = vadd.f32 0.0, %v223
    %v225 = vpop.f32.mrf.mxu0
    %226 = vmatprep.mubr.f32.mxu0 0.0
    %227 = vmatmul.mubr.f32.gmra.mxu0 %v93
    %v228 = vpop.f32.mrf.mxu0
    %v229 = vadd.f32 0.0, %v228
    %v230 = vpop.f32.mrf.mxu0
    %231 = vmatprep.mubr.f32.mxu0 0.0
    %232 = vmatmul.mubr.f32.gmra.mxu0 %v96
    %v233 = vpop.f32.mrf.mxu0
    %v234 = vadd.f32 0.0, %v233
    %v235 = vpop.f32.mrf.mxu0
    %236 = vmatprep.mubr.f32.mxu0 0.0
    %237 = vmatmul.mubr.f32.gmra.mxu0 %v99
    %v238 = vpop.f32.mrf.mxu0
    %v239 = vadd.f32 0.0, %v238
    %v240 = vpop.f32.mrf.mxu0
    %241 = vmatprep.mubr.f32.mxu0 0.0
    %242 = vmatmul.mubr.f32.gmra.mxu0 %v102
    %v243 = vpop.f32.mrf.mxu0
    %v244 = vadd.f32 0.0, %v243
    %v245 = vpop.f32.mrf.mxu0
    %246 = vmatprep.mubr.f32.mxu0 0.0
    %247 = vmatmul.mubr.f32.gmra.mxu0 %v105
    %v248 = vpop.f32.mrf.mxu0
    %v249 = vadd.f32 0.0, %v248
    %v250 = vpop.f32.mrf.mxu0
    %251 = vdwg.mxu0
    %vm252 = vcmask 523264
    %253 = vst.msk [vmem:[#allocation7] sm:$0xff] %vm252, %v174
    %254 = vst.msk [vmem:[#allocation7 + $0x8] sm:$0xff] %vm252, %v179
    %255 = vst.msk [vmem:[#allocation7 + $0x10] sm:$0xff] %vm252, %v184
    %256 = vst.msk [vmem:[#allocation7 + $0x18] sm:$0xff] %vm252, %v189
    %257 = vst.msk [vmem:[#allocation7 + $0x20] sm:$0xff] %vm252, %v194
    %258 = vst.msk [vmem:[#allocation7 + $0x28] sm:$0xff] %vm252, %v199
    %259 = vst.msk [vmem:[#allocation7 + $0x30] sm:$0xff] %vm252, %v204
    %260 = vst.msk [vmem:[#allocation7 + $0x38] sm:$0xff] %vm252, %v209
    %261 = vst.msk [vmem:[#allocation7 + $0x40] sm:$0xff] %vm252, %v214
    %262 = vst.msk [vmem:[#allocation7 + $0x48] sm:$0xff] %vm252, %v219
    %263 = vst.msk [vmem:[#allocation7 + $0x50] sm:$0xff] %vm252, %v224
    %264 = vst.msk [vmem:[#allocation7 + $0x58] sm:$0xff] %vm252, %v229
    %265 = vst.msk [vmem:[#allocation7 + $0x60] sm:$0xff] %vm252, %v234
    %266 = vst.msk [vmem:[#allocation7 + $0x68] sm:$0xff] %vm252, %v239
    %267 = vst.msk [vmem:[#allocation7 + $0x70] sm:$0xff] %vm252, %v244
    %268 = vst.msk [vmem:[#allocation7 + $0x78] sm:$0xff] %vm252, %v249
    // Predicated region
    $region18: #{tpu_custom_call.1} parent=1 // pred_check
      _
    $region19: #{tpu_custom_call.1} parent=1 // pred_check_branch
      %270 = sbr.rel (0) target = $region21
    $region20: #{tpu_custom_call.1} parent=1 // pred_region
      %s272 = ssub.s32 2048, 2048
      %273 = vsyncadd [#allocation4], %s272
      %s274 = sshll.u32 [#allocation7], 4
      %s275 = int_to_ptr.vmem [resolvable:$true] %s274
      %280 = dma.vmem_to_hbm [thread:$0]  %s275, 2048, %s2, [#allocation4], 128, 128, 8
    $region21: #{tpu_custom_call.1} parent=1 // pred_fallthru
      _
    // Predicated region
    $region22: #{tpu_custom_call.1} parent=1 // pred_check
      _
    $region23: #{tpu_custom_call.1} parent=1 // pred_check_branch
      %282 = sbr.rel (0) target = $region25
    $region24: #{tpu_custom_call.1} parent=1 // pred_region
      %283 = dma.done [#allocation4], 2048
    $region25: #{tpu_custom_call.1} parent=1 // pred_fallthru
      _
    %284 = vsyncpa [#allocation3], 1
    %285 = vsyncpa [#allocation6], 1
    %286 = vsyncpa [#allocation4], 1

</llo_original>
